<compile_context>
chip_gen: v7x
topology: tpu7x:2x2x1
jax: 0.10.0
libtpu: 0.0.40
codegen_flags: <defaults>
</compile_context>

<pallas_src>
import jax
import jax.numpy as jnp
from jax import lax
from jax.experimental import pallas as pl
from jax.experimental.pallas import tpu as pltpu


def _bahdanau_kernel(hidden_ref, enc_ref, mask_ref, wq_ref, wk_ref, bqk_ref, we_ref, out_ref):
    TB, L = out_ref.shape                     # static block shape

    # Query projection for the whole batch tile, folded (bq + bk) bias: (TB, H), f32 accum.
    q = jnp.dot(hidden_ref[...], wq_ref[...],
                preferred_element_type=jnp.float32) + bqk_ref[...]

    # Key projection fused over the whole tile: one (TB*L, Dk) @ (Dk, H) MXU matmul.
    k = jnp.dot(enc_ref[...], wk_ref[...], preferred_element_type=jnp.float32)   # (TB*L, H)

    we = we_ref[...]                                                              # (1, H)

    # Per-batch-row epilogue (TB is a tiny static constant -> unrolled):
    # tanh in f32, energy contraction oriented so L lands on the lane axis (lane-dense),
    # additive mask, softmax over L with an EUP reciprocal.
    for b in range(TB):
        z = jnp.tanh(k[b * L:(b + 1) * L, :] + q[b:b + 1, :])                     # (L, H)
        # (1, H) x (L, H)^T -> (1, L)   (trans_b matmul via explicit dot_general)
        e = lax.dot_general(we, z, (((1,), (1,)), ((), ())),
                            preferred_element_type=jnp.float32)                   # (1, L)
        e = e + mask_ref[b:b + 1, :]                                              # 0 / -1e30
        m = jnp.max(e, axis=-1, keepdims=True)
        p = jnp.exp(e - m)
        s = jnp.sum(p, axis=-1, keepdims=True)
        out_ref[b:b + 1, :] = (p * pl.reciprocal(s, approx=True)).astype(out_ref.dtype)


def bahdanau_attention_qkv(hidden, encoder_outputs, params, src_mask=None,
                           *, mxu_dtype=jnp.float32):
    """hidden: (B, Dq); encoder_outputs: (L, B, Dk); src_mask: (L, B) or None -> (B, L)."""
    L, B, Dk = encoder_outputs.shape
    Bq, Dq = hidden.shape
    assert Bq == B
    H = params["wq"].shape[1]

    # Batch tile: everything in one step for small B; 8-row tiles when B is 8-divisible.
    TB = B if (B <= 8 or B % 8 != 0) else 8
    grid = (B // TB,)

    # Fold biases once; the energy-layer bias is a constant under softmax -> dropped.
    bqk = (params["bq"].reshape(1, -1) + params["bk"].reshape(1, -1)).astype(jnp.float32)
    we = params["we"].reshape(1, -1).astype(jnp.float32)

    # Batch-major, 2-D flattened encoder outputs: (B*L, Dk), row index = b*L + l.
    enc2d = jnp.transpose(encoder_outputs, (1, 0, 2)).reshape(B * L, Dk).astype(mxu_dtype)
    hidden_in = hidden.astype(mxu_dtype)
    wq = params["wq"].astype(mxu_dtype)
    wk = params["wk"].astype(mxu_dtype)

    # Additive mask in output orientation (B, L): 0 = keep, -1e30 = masked.
    if src_mask is None:
        mask_add = jnp.zeros((B, L), jnp.float32)
    else:
        mask_add = jnp.where(jnp.transpose(src_mask) == 0, -1e30, 0.0).astype(jnp.float32)

    itemsize = jnp.dtype(mxu_dtype).itemsize
    flops = 2 * B * L * Dk * H + 2 * B * Dq * H + 2 * B * L * H
    transcendentals = B * L * H + B * L
    bytes_accessed = (B * L * Dk * itemsize + B * Dq * itemsize
                      + Dq * H * itemsize + Dk * H * itemsize
                      + 2 * H * 4 + 2 * B * L * 4)

    grid_spec = pltpu.PrefetchScalarGridSpec(
        num_scalar_prefetch=0,
        grid=grid,
        in_specs=[
            pl.BlockSpec((TB, Dq), lambda i: (i, 0)),        # hidden tile
            pl.BlockSpec((TB * L, Dk), lambda i: (i, 0)),    # encoder rows for this tile
            pl.BlockSpec((TB, L), lambda i: (i, 0)),         # additive mask
            pl.BlockSpec((Dq, H), lambda i: (0, 0)),         # W_query
            pl.BlockSpec((Dk, H), lambda i: (0, 0)),         # W_key
            pl.BlockSpec((1, H), lambda i: (0, 0)),          # folded bias (bq + bk)
            pl.BlockSpec((1, H), lambda i: (0, 0)),          # W_energy (row vector)
        ],
        out_specs=pl.BlockSpec((TB, L), lambda i: (i, 0)),   # lane-dense (B, L)
    )

    return pl.pallas_call(
        _bahdanau_kernel,
        out_shape=jax.ShapeDtypeStruct((B, L), jnp.float32),
        grid_spec=grid_spec,
        compiler_params=pltpu.CompilerParams(dimension_semantics=("parallel",)),
        cost_estimate=pl.CostEstimate(flops=flops, transcendentals=transcendentals,
                                      bytes_accessed=bytes_accessed),
    )(hidden_in, enc2d, mask_add, wq, wk, bqk, we)


def _linear_params(key, in_f, out_f):
    """Deterministic nn.Linear-style init: U(-1/sqrt(fan_in), 1/sqrt(fan_in))."""
    kw, kb = jax.random.split(key)
    bound = 1.0 / (in_f ** 0.5)
    w = jax.random.uniform(kw, (in_f, out_f), jnp.float32, -bound, bound)
    b = jax.random.uniform(kb, (1, out_f), jnp.float32, -bound, bound)
    return w, b


if __name__ == "__main__":
    key = jax.random.PRNGKey(0)
    hidden_size = 32
    query_size = hidden_size            # default in the PyTorch module
    key_size = 2 * hidden_size          # default in the PyTorch module
    B, L = 2, 8

    k_h, k_e, k_q, k_k, k_en = jax.random.split(key, 5)
    hidden = jax.random.normal(k_h, (B, query_size), jnp.float32)
    encoder_outputs = jax.random.normal(k_e, (L, B, key_size), jnp.float32)

    wq, bq = _linear_params(k_q, query_size, hidden_size)
    wk, bk = _linear_params(k_k, key_size, hidden_size)
    we_col, be = _linear_params(k_en, hidden_size, 1)            # (H, 1), (1, 1)
    params = dict(wq=wq, bq=bq, wk=wk, bk=bk,
                  we=jnp.transpose(we_col), be=be)               # we as (1, H)

    # src_mask (L, B), True = keep; mask the last two positions of batch element 1.
    src_mask = jnp.ones((L, B), dtype=bool).at[L - 2:, 1].set(False)

    # Pure-JAX reference mirroring the PyTorch forward.
    def reference(h, enc, mask):
        q_ref = h @ wq + bq                                      # (B, H)
        k_ref = enc @ wk + bk                                    # (L, B, H)
        z_ref = jnp.tanh(q_ref[None, :, :] + k_ref)              # (L, B, H)
        en = jnp.einsum("lbh,h->lb", z_ref, we_col[:, 0]) + be[0, 0]
        if mask is not None:
            en = jnp.where(mask, en, -jnp.inf)
        return jax.nn.softmax(en, axis=0).T                      # (B, L)

    # f32 path (tolerance covers the approximate EUP reciprocal in the softmax epilogue).
    for mask in (None, src_mask):
        out = jax.block_until_ready(
            bahdanau_attention_qkv(hidden, encoder_outputs, params, src_mask=mask))
        ref = reference(hidden, encoder_outputs, mask)
        assert out.shape == (B, L)
        assert jnp.allclose(out, ref, atol=5e-3, rtol=5e-3), \
            f"max abs err = {float(jnp.max(jnp.abs(out - ref)))}"

    # bf16 MXU-input path (v6e/v7x): f32 accumulation and f32 softmax; looser tolerance.
    out_bf16 = jax.block_until_ready(
        bahdanau_attention_qkv(hidden, encoder_outputs, params, src_mask=src_mask,
                               mxu_dtype=jnp.bfloat16))
    ref = reference(hidden, encoder_outputs, src_mask)
    assert jnp.allclose(out_bf16, ref, atol=3e-2, rtol=3e-2), \
        f"bf16 max abs err = {float(jnp.max(jnp.abs(out_bf16 - ref)))}"

    print("KERNEL_OK")
</pallas_src>

<mosaic_0001>
module attributes {stable_mosaic.version = 11 : i64} {
  func.func @_bahdanau_kernel(%arg0: i32, %arg1: memref<2x32xf32, #tpu.memory_space<vmem>>, %arg2: memref<16x64xf32, #tpu.memory_space<vmem>>, %arg3: memref<2x8xf32, #tpu.memory_space<vmem>>, %arg4: memref<32x32xf32, #tpu.memory_space<vmem>>, %arg5: memref<64x32xf32, #tpu.memory_space<vmem>>, %arg6: memref<1x32xf32, #tpu.memory_space<vmem>>, %arg7: memref<1x32xf32, #tpu.memory_space<vmem>>, %arg8: memref<2x8xf32, #tpu.memory_space<vmem>>) attributes {dimension_semantics = [#tpu.dimension_semantics<parallel>], iteration_bounds = array<i64: 1>, scalar_prefetch = 0 : i64, scratch_operands = 0 : i64, tpu.core_type = #tpu.core_type<tc>, window_params = [{transform_indices = @transform_0, window_bounds = array<i64: 2, 32>}, {transform_indices = @transform_1, window_bounds = array<i64: 16, 64>}, {transform_indices = @transform_2, window_bounds = array<i64: 2, 8>}, {pipeline_mode = #tpu.pipeline_mode<synchronous>, transform_indices = @transform_3, window_bounds = array<i64: 32, 32>}, {pipeline_mode = #tpu.pipeline_mode<synchronous>, transform_indices = @transform_4, window_bounds = array<i64: 64, 32>}, {pipeline_mode = #tpu.pipeline_mode<synchronous>, transform_indices = @transform_5, window_bounds = array<i64: 1, 32>}, {pipeline_mode = #tpu.pipeline_mode<synchronous>, transform_indices = @transform_6, window_bounds = array<i64: 1, 32>}, {transform_indices = @transform_7, window_bounds = array<i64: 2, 8>}]} {
    %c0 = arith.constant 0 : index
    %c0_0 = arith.constant 0 : index
    %0 = vector.load %arg1[%c0, %c0_0] : memref<2x32xf32, #tpu.memory_space<vmem>>, vector<2x32xf32>
    %c0_1 = arith.constant 0 : index
    %c0_2 = arith.constant 0 : index
    %1 = vector.load %arg4[%c0_1, %c0_2] : memref<32x32xf32, #tpu.memory_space<vmem>>, vector<32x32xf32>
    %cst = arith.constant dense<0.000000e+00> : vector<2x32xf32>
    %2 = tpu.matmul %0, %1, %cst {dimension_numbers = #tpu.dot_dimension_numbers<[1], [0], [0], [1], [0, 0, 1, 1], [], []>} : vector<2x32xf32>, vector<32x32xf32>, vector<2x32xf32> -> vector<2x32xf32>
    %c0_3 = arith.constant 0 : index
    %c0_4 = arith.constant 0 : index
    %3 = vector.load %arg6[%c0_3, %c0_4] : memref<1x32xf32, #tpu.memory_space<vmem>>, vector<1x32xf32>
    %4 = vector.broadcast %3 : vector<1x32xf32> to vector<2x32xf32>
    %5 = arith.addf %2, %4 : vector<2x32xf32>
    %c0_5 = arith.constant 0 : index
    %c0_6 = arith.constant 0 : index
    %6 = vector.load %arg2[%c0_5, %c0_6] : memref<16x64xf32, #tpu.memory_space<vmem>>, vector<16x64xf32>
    %c0_7 = arith.constant 0 : index
    %c0_8 = arith.constant 0 : index
    %7 = vector.load %arg5[%c0_7, %c0_8] : memref<64x32xf32, #tpu.memory_space<vmem>>, vector<64x32xf32>
    %cst_9 = arith.constant dense<0.000000e+00> : vector<16x32xf32>
    %8 = tpu.matmul %6, %7, %cst_9 {dimension_numbers = #tpu.dot_dimension_numbers<[1], [0], [0], [1], [0, 0, 1, 1], [], []>} : vector<16x64xf32>, vector<64x32xf32>, vector<16x32xf32> -> vector<16x32xf32>
    %c0_10 = arith.constant 0 : index
    %c0_11 = arith.constant 0 : index
    %9 = vector.load %arg7[%c0_10, %c0_11] : memref<1x32xf32, #tpu.memory_space<vmem>>, vector<1x32xf32>
    %10 = vector.extract_strided_slice %8 {offsets = [0, 0], sizes = [8, 32], strides = [1, 1]} : vector<16x32xf32> to vector<8x32xf32>
    %11 = vector.extract_strided_slice %5 {offsets = [0, 0], sizes = [1, 32], strides = [1, 1]} : vector<2x32xf32> to vector<1x32xf32>
    %12 = vector.broadcast %11 : vector<1x32xf32> to vector<8x32xf32>
    %13 = arith.addf %10, %12 : vector<8x32xf32>
    %14 = math.tanh %13 : vector<8x32xf32>
    %cst_12 = arith.constant dense<0.000000e+00> : vector<1x8xf32>
    %15 = tpu.matmul %9, %14, %cst_12 {dimension_numbers = #tpu.dot_dimension_numbers<[1], [1], [0], [0], [0, 0, 1, 0], [], []>} : vector<1x32xf32>, vector<8x32xf32>, vector<1x8xf32> -> vector<1x8xf32>
    %c0_13 = arith.constant 0 : index
    %c0_14 = arith.constant 0 : index
    %16 = vector.load %arg3[%c0_13, %c0_14] : memref<2x8xf32, #tpu.memory_space<vmem>>, vector<1x8xf32>
    %17 = arith.addf %15, %16 : vector<1x8xf32>
    %cst_15 = arith.constant dense<0xFF800000> : vector<1xf32>
    %18 = vector.multi_reduction <maximumf>, %17, %cst_15 [1] : vector<1x8xf32> to vector<1xf32>
    %19 = vector.shape_cast %18 : vector<1xf32> to vector<1x1xf32>
    %20 = vector.broadcast %19 : vector<1x1xf32> to vector<1x8xf32>
    %21 = arith.subf %17, %20 : vector<1x8xf32>
    %22 = math.exp %21 : vector<1x8xf32>
    %cst_16 = arith.constant dense<0.000000e+00> : vector<1xf32>
    %23 = vector.multi_reduction <add>, %22, %cst_16 [1] : vector<1x8xf32> to vector<1xf32>
    %24 = vector.shape_cast %23 : vector<1xf32> to vector<1x1xf32>
    %25 = tpu.reciprocal %24 {approx = true} : vector<1x1xf32> -> vector<1x1xf32>
    %26 = vector.broadcast %25 : vector<1x1xf32> to vector<1x8xf32>
    %27 = arith.mulf %22, %26 : vector<1x8xf32>
    %c0_17 = arith.constant 0 : index
    %c0_18 = arith.constant 0 : index
    %28 = vector.load %arg8[%c0_17, %c0_18] : memref<2x8xf32, #tpu.memory_space<vmem>>, vector<1x8xf32>
    tpu.vector_store %arg8[%c0_17, %c0_18], %27 {strides = array<i32>} : memref<2x8xf32, #tpu.memory_space<vmem>>, vector<1x8xf32>,
    %29 = vector.extract_strided_slice %8 {offsets = [8, 0], sizes = [8, 32], strides = [1, 1]} : vector<16x32xf32> to vector<8x32xf32>
    %30 = vector.extract_strided_slice %5 {offsets = [1, 0], sizes = [1, 32], strides = [1, 1]} : vector<2x32xf32> to vector<1x32xf32>
    %31 = vector.broadcast %30 : vector<1x32xf32> to vector<8x32xf32>
    %32 = arith.addf %29, %31 : vector<8x32xf32>
    %33 = math.tanh %32 : vector<8x32xf32>
    %cst_19 = arith.constant dense<0.000000e+00> : vector<1x8xf32>
    %34 = tpu.matmul %9, %33, %cst_19 {dimension_numbers = #tpu.dot_dimension_numbers<[1], [1], [0], [0], [0, 0, 1, 0], [], []>} : vector<1x32xf32>, vector<8x32xf32>, vector<1x8xf32> -> vector<1x8xf32>
    %c1 = arith.constant 1 : index
    %c0_20 = arith.constant 0 : index
    %35 = vector.load %arg3[%c1, %c0_20] : memref<2x8xf32, #tpu.memory_space<vmem>>, vector<1x8xf32>
    %36 = arith.addf %34, %35 : vector<1x8xf32>
    %cst_21 = arith.constant dense<0xFF800000> : vector<1xf32>
    %37 = vector.multi_reduction <maximumf>, %36, %cst_21 [1] : vector<1x8xf32> to vector<1xf32>
    %38 = vector.shape_cast %37 : vector<1xf32> to vector<1x1xf32>
    %39 = vector.broadcast %38 : vector<1x1xf32> to vector<1x8xf32>
    %40 = arith.subf %36, %39 : vector<1x8xf32>
    %41 = math.exp %40 : vector<1x8xf32>
    %cst_22 = arith.constant dense<0.000000e+00> : vector<1xf32>
    %42 = vector.multi_reduction <add>, %41, %cst_22 [1] : vector<1x8xf32> to vector<1xf32>
    %43 = vector.shape_cast %42 : vector<1xf32> to vector<1x1xf32>
    %44 = tpu.reciprocal %43 {approx = true} : vector<1x1xf32> -> vector<1x1xf32>
    %45 = vector.broadcast %44 : vector<1x1xf32> to vector<1x8xf32>
    %46 = arith.mulf %41, %45 : vector<1x8xf32>
    %c1_23 = arith.constant 1 : index
    %c0_24 = arith.constant 0 : index
    %47 = vector.load %arg8[%c1_23, %c0_24] : memref<2x8xf32, #tpu.memory_space<vmem>>, vector<1x8xf32>
    tpu.vector_store %arg8[%c1_23, %c0_24], %46 {strides = array<i32>} : memref<2x8xf32, #tpu.memory_space<vmem>>, vector<1x8xf32>,
    return
  }
  func.func @transform_0(%arg0: i32) -> (i32, i32) {
    %c0_i32 = arith.constant 0 : i32
    %c0_i32_0 = arith.constant 0 : i32
    return %arg0, %c0_i32 : i32, i32
  }
  func.func @transform_1(%arg0: i32) -> (i32, i32) {
    %c0_i32 = arith.constant 0 : i32
    %c0_i32_0 = arith.constant 0 : i32
    return %arg0, %c0_i32 : i32, i32
  }
  func.func @transform_2(%arg0: i32) -> (i32, i32) {
    %c0_i32 = arith.constant 0 : i32
    %c0_i32_0 = arith.constant 0 : i32
    return %arg0, %c0_i32 : i32, i32
  }
  func.func @transform_3(%arg0: i32) -> (i32, i32) {
    %c0_i32 = arith.constant 0 : i32
    %c0_i32_0 = arith.constant 0 : i32
    %c0_i32_1 = arith.constant 0 : i32
    return %c0_i32, %c0_i32_0 : i32, i32
  }
  func.func @transform_4(%arg0: i32) -> (i32, i32) {
    %c0_i32 = arith.constant 0 : i32
    %c0_i32_0 = arith.constant 0 : i32
    %c0_i32_1 = arith.constant 0 : i32
    return %c0_i32, %c0_i32_0 : i32, i32
  }
  func.func @transform_5(%arg0: i32) -> (i32, i32) {
    %c0_i32 = arith.constant 0 : i32
    %c0_i32_0 = arith.constant 0 : i32
    %c0_i32_1 = arith.constant 0 : i32
    return %c0_i32, %c0_i32_0 : i32, i32
  }
  func.func @transform_6(%arg0: i32) -> (i32, i32) {
    %c0_i32 = arith.constant 0 : i32
    %c0_i32_0 = arith.constant 0 : i32
    %c0_i32_1 = arith.constant 0 : i32
    return %c0_i32, %c0_i32_0 : i32, i32
  }
  func.func @transform_7(%arg0: i32) -> (i32, i32) {
    %c0_i32 = arith.constant 0 : i32
    %c0_i32_0 = arith.constant 0 : i32
    return %arg0, %c0_i32 : i32, i32
  }
}

</mosaic_0001>

<llo_original>
// kernel: tpu_custom_call.1
$region0: #{tpu_custom_call.1}
  #allocation0 [shape = 'u32[]', space=smem, size = 0x4, offset = 0x4, fixed_abs, tag = 'smem constant byte address 0x4 - core index']
  #allocation1 [shape = 'u32[144,128]{1,0:T(1,128)}', space=vmem, size = 0x12000, scoped, tag = 'internal scratch']
  %s0 = inlined_call_operand.vmem [shape: f32[2,32], index: 0, kind: input, shape index: {}]
  %s1 = inlined_call_operand.vmem [shape: f32[16,64], index: 1, kind: input, shape index: {}]
  %s2 = inlined_call_operand.vmem [shape: f32[2,8], index: 2, kind: input, shape index: {}]
  %s3 = inlined_call_operand.vmem [shape: f32[32,32], index: 3, kind: input, shape index: {}]
  %s4 = inlined_call_operand.vmem [shape: f32[64,32], index: 4, kind: input, shape index: {}]
  %s5 = inlined_call_operand.vmem [shape: f32[1,32], index: 5, kind: input, shape index: {}]
  %s6 = inlined_call_operand.vmem [shape: f32[1,32], index: 6, kind: input, shape index: {}]
  %s7 = inlined_call_operand.hbm [shape: f32[2,8], index: 7, kind: output, shape index: {}]
  %s8 = sld [smem:[#allocation0]]
  $region38: #{tpu_custom_call.1} parent=0
    _
  %s10 = ssub.s32 1, %s8
  %s11 = scalar_select 0, %s10, %s8
  $region1: #{tpu_custom_call.1} parent=0
    #allocation2 [shape = 'u8[1024]{0}', space=vmem, size = 0x400, scoped, tag = 'output window, operand 0, single buffered']
    #allocation3 [shape = 's32[1]{0}', space=sflag, size = 0x4, scoped, tag = 'scoped memory for tpu_custom_call.1']
    %12 = vsyncpa [#allocation3], 0
    // Predicated region
    $region2: #{tpu_custom_call.1} parent=1 // pred_check
      _
    $region3: #{tpu_custom_call.1} parent=1 // pred_check_branch
      %14 = sbr.rel (0) target = $region5
    $region4: #{tpu_custom_call.1} parent=1 // pred_region
      _
    $region5: #{tpu_custom_call.1} parent=1 // pred_fallthru
      _
    // Predicated region
    $region6: #{tpu_custom_call.1} parent=1 // pred_check
      _
    $region7: #{tpu_custom_call.1} parent=1 // pred_check_branch
      %16 = sbr.rel (0) target = $region9
    $region8: #{tpu_custom_call.1} parent=1 // pred_region
      _
    $region9: #{tpu_custom_call.1} parent=1 // pred_fallthru
      _
    // Predicated region
    $region10: #{tpu_custom_call.1} parent=1 // pred_check
      _
    $region11: #{tpu_custom_call.1} parent=1 // pred_check_branch
      %18 = sbr.rel (0) target = $region13
    $region12: #{tpu_custom_call.1} parent=1 // pred_region
      _
    $region13: #{tpu_custom_call.1} parent=1 // pred_fallthru
      _
    // Predicated region
    $region14: #{tpu_custom_call.1} parent=1 // pred_check
      _
    $region15: #{tpu_custom_call.1} parent=1 // pred_check_branch
      %20 = sbr.rel (0) target = $region17
    $region16: #{tpu_custom_call.1} parent=1 // pred_region
      _
    $region17: #{tpu_custom_call.1} parent=1 // pred_fallthru
      _
    // Predicated region
    $region18: #{tpu_custom_call.1} parent=1 // pred_check
      _
    $region19: #{tpu_custom_call.1} parent=1 // pred_check_branch
      %22 = sbr.rel (0) target = $region21
    $region20: #{tpu_custom_call.1} parent=1 // pred_region
      _
    $region21: #{tpu_custom_call.1} parent=1 // pred_fallthru
      _
    // Predicated region
    $region22: #{tpu_custom_call.1} parent=1 // pred_check
      _
    $region23: #{tpu_custom_call.1} parent=1 // pred_check_branch
      %24 = sbr.rel (0) target = $region25
    $region24: #{tpu_custom_call.1} parent=1 // pred_region
      _
    $region25: #{tpu_custom_call.1} parent=1 // pred_fallthru
      _
    // Predicated region
    $region26: #{tpu_custom_call.1} parent=1 // pred_check
      _
    $region27: #{tpu_custom_call.1} parent=1 // pred_check_branch
      %26 = sbr.rel (0) target = $region29
    $region28: #{tpu_custom_call.1} parent=1 // pred_region
      _
    $region29: #{tpu_custom_call.1} parent=1 // pred_fallthru
      _
    %v27 = vld [vmem:[%s0] sm:$0x3]
    %v28 = vld [vmem:[%s3] sm:$0xff]
    %v29 = vld [vmem:[%s3 + $0x8] sm:$0xff]
    %v30 = vld [vmem:[%s3 + $0x10] sm:$0xff]
    %v31 = vld [vmem:[%s3 + $0x18] sm:$0xff]
    %v32 = vld [vmem:[%s5] sm:$0x1]
    %v34 = vlaneseq
    %v35 = vshrl.u32 %v34, 7
    %v36 = vsub.s32 0, %v35
    %v37 = vrot.slane %v32, %v36
    %vm39 = vcmask 261120
    %v41 = vsel %vm39, %v27, 0
    %43 = vmatprep.subr.mxu0 0.0
    %44 = vmatpush1.msra.mxu0 %v28
    %45 = vmatprep.subr.mxu0 0.0
    %46 = vmatpush1.msra.mxu0 %v29
    %47 = vmatprep.subr.mxu0 0.0
    %48 = vmatpush1.msra.mxu0 %v30
    %49 = vmatprep.subr.mxu0 0.0
    %50 = vmatpush1.msra.mxu0 %v31
    %51 = vmatprep.subr.mxu0 0.0
    %52 = vmatpush1.msra.mxu0 0.0
    %53 = vmatprep.subr.mxu0 0.0
    %54 = vmatpush1.msra.mxu0 0.0
    %55 = vmatprep.subr.mxu0 0.0
    %56 = vmatpush1.msra.mxu0 0.0
    %57 = vmatprep.subr.mxu0 0.0
    %58 = vmatpush1.msra.mxu0 0.0
    %59 = vmatprep.subr.mxu0 0.0
    %60 = vmatpush1.msra.mxu0 0.0
    %61 = vmatprep.subr.mxu0 0.0
    %62 = vmatpush1.msra.mxu0 0.0
    %63 = vmatprep.subr.mxu0 0.0
    %64 = vmatpush1.msra.mxu0 0.0
    %65 = vmatprep.subr.mxu0 0.0
    %66 = vmatpush1.msra.mxu0 0.0
    %67 = vmatprep.subr.mxu0 0.0
    %68 = vmatpush1.msra.mxu0 0.0
    %69 = vmatprep.subr.mxu0 0.0
    %70 = vmatpush1.msra.mxu0 0.0
    %71 = vmatprep.subr.mxu0 0.0
    %72 = vmatpush1.msra.mxu0 0.0
    %73 = vmatprep.subr.mxu0 0.0
    %74 = vmatpush1.msra.mxu0 0.0
    %75 = vmatprep.subr.mxu0 0.0
    %76 = vmatpush1.msra.mxu0 0.0
    %77 = vmatprep.subr.mxu0 0.0
    %78 = vmatpush1.msra.mxu0 0.0
    %79 = vmatprep.subr.mxu0 0.0
    %80 = vmatpush1.msra.mxu0 0.0
    %81 = vmatprep.subr.mxu0 0.0
    %82 = vmatpush1.msra.mxu0 0.0
    %83 = vmatprep.subr.mxu0 0.0
    %84 = vmatpush1.msra.mxu0 0.0
    %85 = vmatprep.subr.mxu0 0.0
    %86 = vmatpush1.msra.mxu0 0.0
    %87 = vmatprep.subr.mxu0 0.0
    %88 = vmatpush1.msra.mxu0 0.0
    %89 = vmatprep.subr.mxu0 0.0
    %90 = vmatpush1.msra.mxu0 0.0
    %91 = vmatprep.subr.mxu0 0.0
    %92 = vmatpush1.msra.mxu0 0.0
    %93 = vmatprep.subr.mxu0 0.0
    %94 = vmatpush1.msra.mxu0 0.0
    %95 = vmatprep.subr.mxu0 0.0
    %96 = vmatpush1.msra.mxu0 0.0
    %97 = vmatprep.subr.mxu0 0.0
    %98 = vmatpush1.msra.mxu0 0.0
    %99 = vmatprep.subr.mxu0 0.0
    %100 = vmatpush1.msra.mxu0 0.0
    %101 = vmatprep.subr.mxu0 0.0
    %102 = vmatpush1.msra.mxu0 0.0
    %103 = vmatprep.subr.mxu0 0.0
    %104 = vmatpush1.msra.mxu0 0.0
    %105 = vmatprep.subr.mxu0 0.0
    %106 = vmatpush1.msra.mxu0 0.0
    %107 = vmatprep.mubr.f32.mxu0 0.0
    %108 = vmatmul.mubr.f32.gmra.mrb[0].mxu0 %v41
    %v109 = vpop.f32.mrb[0].mxu0
    %v110 = vadd.f32 %v37, %v109
    %v111 = vpop.f32.mrb[0].mxu0
    %112 = vdwg.mxu0
    %v113 = vld [vmem:[%s1] sm:$0xff]
    %v114 = vld [vmem:[%s1 + $0x8] sm:$0xff]
    %v115 = vld [vmem:[%s4] sm:$0xff]
    %v116 = vld [vmem:[%s4 + $0x8] sm:$0xff]
    %v117 = vld [vmem:[%s4 + $0x10] sm:$0xff]
    %v118 = vld [vmem:[%s4 + $0x18] sm:$0xff]
    %v119 = vld [vmem:[%s4 + $0x20] sm:$0xff]
    %v120 = vld [vmem:[%s4 + $0x28] sm:$0xff]
    %v121 = vld [vmem:[%s4 + $0x30] sm:$0xff]
    %v122 = vld [vmem:[%s4 + $0x38] sm:$0xff]
    %vm123 = vcmask 523264
    %v125 = vsel %vm123, %v113, 0
    %v128 = vsel %vm123, %v114, 0
    %130 = vmatprep.subr.mxu0 0.0
    %131 = vmatpush1.msra.mxu0 %v115
    %132 = vmatprep.subr.mxu0 0.0
    %133 = vmatpush1.msra.mxu0 %v116
    %134 = vmatprep.subr.mxu0 0.0
    %135 = vmatpush1.msra.mxu0 %v117
    %136 = vmatprep.subr.mxu0 0.0
    %137 = vmatpush1.msra.mxu0 %v118
    %138 = vmatprep.subr.mxu0 0.0
    %139 = vmatpush1.msra.mxu0 %v119
    %140 = vmatprep.subr.mxu0 0.0
    %141 = vmatpush1.msra.mxu0 %v120
    %142 = vmatprep.subr.mxu0 0.0
    %143 = vmatpush1.msra.mxu0 %v121
    %144 = vmatprep.subr.mxu0 0.0
    %145 = vmatpush1.msra.mxu0 %v122
    %146 = vmatprep.subr.mxu0 0.0
    %147 = vmatpush1.msra.mxu0 0.0
    %148 = vmatprep.subr.mxu0 0.0
    %149 = vmatpush1.msra.mxu0 0.0
    %150 = vmatprep.subr.mxu0 0.0
    %151 = vmatpush1.msra.mxu0 0.0
    %152 = vmatprep.subr.mxu0 0.0
    %153 = vmatpush1.msra.mxu0 0.0
    %154 = vmatprep.subr.mxu0 0.0
    %155 = vmatpush1.msra.mxu0 0.0
    %156 = vmatprep.subr.mxu0 0.0
    %157 = vmatpush1.msra.mxu0 0.0
    %158 = vmatprep.subr.mxu0 0.0
    %159 = vmatpush1.msra.mxu0 0.0
    %160 = vmatprep.subr.mxu0 0.0
    %161 = vmatpush1.msra.mxu0 0.0
    %162 = vmatprep.subr.mxu0 0.0
    %163 = vmatpush1.msra.mxu0 0.0
    %164 = vmatprep.subr.mxu0 0.0
    %165 = vmatpush1.msra.mxu0 0.0
    %166 = vmatprep.subr.mxu0 0.0
    %167 = vmatpush1.msra.mxu0 0.0
    %168 = vmatprep.subr.mxu0 0.0
    %169 = vmatpush1.msra.mxu0 0.0
    %170 = vmatprep.subr.mxu0 0.0
    %171 = vmatpush1.msra.mxu0 0.0
    %172 = vmatprep.subr.mxu0 0.0
    %173 = vmatpush1.msra.mxu0 0.0
    %174 = vmatprep.subr.mxu0 0.0
    %175 = vmatpush1.msra.mxu0 0.0
    %176 = vmatprep.subr.mxu0 0.0
    %177 = vmatpush1.msra.mxu0 0.0
    %178 = vmatprep.subr.mxu0 0.0
    %179 = vmatpush1.msra.mxu0 0.0
    %180 = vmatprep.subr.mxu0 0.0
    %181 = vmatpush1.msra.mxu0 0.0
    %182 = vmatprep.subr.mxu0 0.0
    %183 = vmatpush1.msra.mxu0 0.0
    %184 = vmatprep.subr.mxu0 0.0
    %185 = vmatpush1.msra.mxu0 0.0
    %186 = vmatprep.subr.mxu0 0.0
    %187 = vmatpush1.msra.mxu0 0.0
    %188 = vmatprep.subr.mxu0 0.0
    %189 = vmatpush1.msra.mxu0 0.0
    %190 = vmatprep.subr.mxu0 0.0
    %191 = vmatpush1.msra.mxu0 0.0
    %192 = vmatprep.subr.mxu0 0.0
    %193 = vmatpush1.msra.mxu0 0.0
    %194 = vmatprep.mubr.f32.mxu0 0.0
    %195 = vmatmul.mubr.f32.gmra.mrb[0].mxu0 %v125
    %v196 = vpop.f32.mrb[0].mxu0
    %v197 = vadd.f32 0.0, %v196
    %v198 = vpop.f32.mrb[0].mxu0
    %199 = vmatprep.mubr.f32.mxu0 0.0
    %200 = vmatmul.mubr.f32.gmra.mrb[0].mxu0 %v128
    %v201 = vpop.f32.mrb[0].mxu0
    %v202 = vadd.f32 0.0, %v201
    %v203 = vpop.f32.mrb[0].mxu0
    %204 = vdwg.mxu0
    %v205 = vld [vmem:[%s6] sm:$0x1]
    %v206 = vlaneseq
    %v207 = vshrl.u32 %v206, 7
    %v208 = vsub.s32 0, %v207
    %v209 = vrot.slane %v110, %v208
    %v210 = vadd.f32 %v197, %v209
    %v211 = vtanh.pop %v210
    %v212 = vld [vmem:[%s2] sm:$0x1]
    %v214 = vsel %vm39, %v205, 0
    %v217 = vsel %vm39, %v211, 0
    %219 = vmatprep.subr.mxu0 0.0
    %220 = vmatpush1.xpose.msra.mxu0 %v217
    %221 = vmatprep.subr.mxu0 0.0
    %222 = vmatpush1.xpose.msra.mxu0 0.0
    %223 = vmatprep.subr.mxu0 0.0
    %224 = vmatpush1.xpose.msra.mxu0 0.0
    %225 = vmatprep.subr.mxu0 0.0
    %226 = vmatpush1.xpose.msra.mxu0 0.0
    %227 = vmatprep.subr.mxu0 0.0
    %228 = vmatpush1.xpose.msra.mxu0 0.0
    %229 = vmatprep.subr.mxu0 0.0
    %230 = vmatpush1.xpose.msra.mxu0 0.0
    %231 = vmatprep.subr.mxu0 0.0
    %232 = vmatpush1.xpose.msra.mxu0 0.0
    %233 = vmatprep.subr.mxu0 0.0
    %234 = vmatpush1.xpose.msra.mxu0 0.0
    %235 = vmatprep.subr.mxu0 0.0
    %236 = vmatpush1.xpose.msra.mxu0 0.0
    %237 = vmatprep.subr.mxu0 0.0
    %238 = vmatpush1.xpose.msra.mxu0 0.0
    %239 = vmatprep.subr.mxu0 0.0
    %240 = vmatpush1.xpose.msra.mxu0 0.0
    %241 = vmatprep.subr.mxu0 0.0
    %242 = vmatpush1.xpose.msra.mxu0 0.0
    %243 = vmatprep.subr.mxu0 0.0
    %244 = vmatpush1.xpose.msra.mxu0 0.0
    %245 = vmatprep.subr.mxu0 0.0
    %246 = vmatpush1.xpose.msra.mxu0 0.0
    %247 = vmatprep.subr.mxu0 0.0
    %248 = vmatpush1.xpose.msra.mxu0 0.0
    %249 = vmatprep.subr.mxu0 0.0
    %250 = vmatpush1.xpose.msra.mxu0 0.0
    %251 = vmatprep.subr.mxu0 0.0
    %252 = vmatpush1.xpose.msra.mxu0 0.0
    %253 = vmatprep.subr.mxu0 0.0
    %254 = vmatpush1.xpose.msra.mxu0 0.0
    %255 = vmatprep.subr.mxu0 0.0
    %256 = vmatpush1.xpose.msra.mxu0 0.0
    %257 = vmatprep.subr.mxu0 0.0
    %258 = vmatpush1.xpose.msra.mxu0 0.0
    %259 = vmatprep.subr.mxu0 0.0
    %260 = vmatpush1.xpose.msra.mxu0 0.0
    %261 = vmatprep.subr.mxu0 0.0
    %262 = vmatpush1.xpose.msra.mxu0 0.0
    %263 = vmatprep.subr.mxu0 0.0
    %264 = vmatpush1.xpose.msra.mxu0 0.0
    %265 = vmatprep.subr.mxu0 0.0
    %266 = vmatpush1.xpose.msra.mxu0 0.0
    %267 = vmatprep.subr.mxu0 0.0
    %268 = vmatpush1.xpose.msra.mxu0 0.0
    %269 = vmatprep.subr.mxu0 0.0
    %270 = vmatpush1.xpose.msra.mxu0 0.0
    %271 = vmatprep.subr.mxu0 0.0
    %272 = vmatpush1.xpose.msra.mxu0 0.0
    %273 = vmatprep.subr.mxu0 0.0
    %274 = vmatpush1.xpose.msra.mxu0 0.0
    %275 = vmatprep.subr.mxu0 0.0
    %276 = vmatpush1.xpose.msra.mxu0 0.0
    %277 = vmatprep.subr.mxu0 0.0
    %278 = vmatpush1.xpose.msra.mxu0 0.0
    %279 = vmatprep.subr.mxu0 0.0
    %280 = vmatpush1.xpose.msra.mxu0 0.0
    %281 = vmatprep.subr.mxu0 0.0
    %282 = vmatpush1.xpose.msra.mxu0 0.0
    %283 = vmatprep.mubr.f32.mxu0 0.0
    %284 = vmatmul.mubr.f32.gmra.mrb[0].mxu0 %v214
    %v285 = vpop.f32.mrb[0].mxu0
    %v286 = vadd.f32 %v212, %v285
    %v287 = vpop.f32.mrb[0].mxu0
    %288 = vdwg.mxu0
    %vm289 = vcmask 57344
    %v290 = vsel %vm289, %v286, -inf
    %291 = vmax.xlane.f32.xlu0 %v290
    %v292 = vpop.xlane.xlu0 %291
    %v293 = vsub.f32 %v286, %v292
    %v294 = vmul.f32 %v293, 1.442695
    %v295 = vpow.pop %v294
    %v296 = vsel %vm289, %v295, 0.0
    %297 = vadd.xlane.f32.xlu0 %v296
    %v298 = vpop.xlane.xlu0 %297
    %v299 = vrcp.pop %v298
    %v300 = vmul.f32 %v295, %v299
    %301 = vst.msk [vmem:[#allocation2] sm:$0x1] %vm289, %v300
    %v302 = vlaneseq
    %v303 = vshrl.u32 %v302, 7
    %v304 = vsub.s32 1, %v303
    %v305 = vrot.slane %v110, %v304
    %v306 = vadd.f32 %v202, %v305
    %v307 = vtanh.pop %v306
    %v308 = vld [vmem:[%s2 + $0x1] sm:$0x1]
    %v310 = vsel %vm39, %v307, 0
    %312 = vmatprep.subr.mxu0 0.0
    %313 = vmatpush1.xpose.msra.mxu0 %v310
    %314 = vmatprep.subr.mxu0 0.0
    %315 = vmatpush1.xpose.msra.mxu0 0.0
    %316 = vmatprep.subr.mxu0 0.0
    %317 = vmatpush1.xpose.msra.mxu0 0.0
    %318 = vmatprep.subr.mxu0 0.0
    %319 = vmatpush1.xpose.msra.mxu0 0.0
    %320 = vmatprep.subr.mxu0 0.0
    %321 = vmatpush1.xpose.msra.mxu0 0.0
    %322 = vmatprep.subr.mxu0 0.0
    %323 = vmatpush1.xpose.msra.mxu0 0.0
    %324 = vmatprep.subr.mxu0 0.0
    %325 = vmatpush1.xpose.msra.mxu0 0.0
    %326 = vmatprep.subr.mxu0 0.0
    %327 = vmatpush1.xpose.msra.mxu0 0.0
    %328 = vmatprep.subr.mxu0 0.0
    %329 = vmatpush1.xpose.msra.mxu0 0.0
    %330 = vmatprep.subr.mxu0 0.0
    %331 = vmatpush1.xpose.msra.mxu0 0.0
    %332 = vmatprep.subr.mxu0 0.0
    %333 = vmatpush1.xpose.msra.mxu0 0.0
    %334 = vmatprep.subr.mxu0 0.0
    %335 = vmatpush1.xpose.msra.mxu0 0.0
    %336 = vmatprep.subr.mxu0 0.0
    %337 = vmatpush1.xpose.msra.mxu0 0.0
    %338 = vmatprep.subr.mxu0 0.0
    %339 = vmatpush1.xpose.msra.mxu0 0.0
    %340 = vmatprep.subr.mxu0 0.0
    %341 = vmatpush1.xpose.msra.mxu0 0.0
    %342 = vmatprep.subr.mxu0 0.0
    %343 = vmatpush1.xpose.msra.mxu0 0.0
    %344 = vmatprep.subr.mxu0 0.0
    %345 = vmatpush1.xpose.msra.mxu0 0.0
    %346 = vmatprep.subr.mxu0 0.0
    %347 = vmatpush1.xpose.msra.mxu0 0.0
    %348 = vmatprep.subr.mxu0 0.0
    %349 = vmatpush1.xpose.msra.mxu0 0.0
    %350 = vmatprep.subr.mxu0 0.0
    %351 = vmatpush1.xpose.msra.mxu0 0.0
    %352 = vmatprep.subr.mxu0 0.0
    %353 = vmatpush1.xpose.msra.mxu0 0.0
    %354 = vmatprep.subr.mxu0 0.0
    %355 = vmatpush1.xpose.msra.mxu0 0.0
    %356 = vmatprep.subr.mxu0 0.0
    %357 = vmatpush1.xpose.msra.mxu0 0.0
    %358 = vmatprep.subr.mxu0 0.0
    %359 = vmatpush1.xpose.msra.mxu0 0.0
    %360 = vmatprep.subr.mxu0 0.0
    %361 = vmatpush1.xpose.msra.mxu0 0.0
    %362 = vmatprep.subr.mxu0 0.0
    %363 = vmatpush1.xpose.msra.mxu0 0.0
    %364 = vmatprep.subr.mxu0 0.0
    %365 = vmatpush1.xpose.msra.mxu0 0.0
    %366 = vmatprep.subr.mxu0 0.0
    %367 = vmatpush1.xpose.msra.mxu0 0.0
    %368 = vmatprep.subr.mxu0 0.0
    %369 = vmatpush1.xpose.msra.mxu0 0.0
    %370 = vmatprep.subr.mxu0 0.0
    %371 = vmatpush1.xpose.msra.mxu0 0.0
    %372 = vmatprep.subr.mxu0 0.0
    %373 = vmatpush1.xpose.msra.mxu0 0.0
    %374 = vmatprep.subr.mxu0 0.0
    %375 = vmatpush1.xpose.msra.mxu0 0.0
    %376 = vmatprep.mubr.f32.mxu0 0.0
    %377 = vmatmul.mubr.f32.gmra.mrb[0].mxu0 %v214
    %v378 = vpop.f32.mrb[0].mxu0
    %v379 = vadd.f32 %v308, %v378
    %v380 = vpop.f32.mrb[0].mxu0
    %381 = vdwg.mxu0
    %v382 = vsel %vm289, %v379, -inf
    %383 = vmax.xlane.f32.xlu0 %v382
    %v384 = vpop.xlane.xlu0 %383
    %v385 = vsub.f32 %v379, %v384
    %v386 = vmul.f32 %v385, 1.442695
    %v387 = vpow.pop %v386
    %v388 = vsel %vm289, %v387, 0.0
    %389 = vadd.xlane.f32.xlu0 %v388
    %v390 = vpop.xlane.xlu0 %389
    %v391 = vrcp.pop %v390
    %v392 = vmul.f32 %v387, %v391
    %393 = vst.msk [vmem:[#allocation2 + $0x1] sm:$0x1] %vm289, %v392
    // Predicated region
    $region30: #{tpu_custom_call.1} parent=1 // pred_check
      _
    $region31: #{tpu_custom_call.1} parent=1 // pred_check_branch
      %395 = sbr.rel (0) target = $region33
    $region32: #{tpu_custom_call.1} parent=1 // pred_region
      %s397 = ssub.s32 32, 32
      %398 = vsyncadd [#allocation3], %s397
      %s400 = sshll.u32 [#allocation2], 4
      %s401 = int_to_ptr.vmem [resolvable:$true] %s400
      %403 = dma.vmem_to_hbm [thread:$0]  %s401, 32, %s7, [#allocation3]
    $region33: #{tpu_custom_call.1} parent=1 // pred_fallthru
      _
    // Predicated region
    $region34: #{tpu_custom_call.1} parent=1 // pred_check
      _
    $region35: #{tpu_custom_call.1} parent=1 // pred_check_branch
      %405 = sbr.rel (0) target = $region37
    $region36: #{tpu_custom_call.1} parent=1 // pred_region
      %406 = dma.done [#allocation3], 32
    $region37: #{tpu_custom_call.1} parent=1 // pred_fallthru
      _
    %407 = vsyncpa [#allocation3], 1

</llo_original>
